<compile_context>
chip_gen: v7x
topology: tpu7x:2x2x1
jax: 0.10.0
libtpu: 0.0.40
codegen_flags: <defaults>
</compile_context>

<pallas_src>
import jax
import jax.numpy as jnp
from jax.experimental import pallas as pl
from jax.experimental.pallas import tpu as pltpu

# ---------------- problem sizes (small, consistent with NCHW conv input) ----
B, C, H, W = 2, 4, 16, 16
HW = H * W                 # 256  (multiple of 128 -> lane-aligned channel slices)
D = C * HW                 # 1024 flattened feature dim
HD = 32                    # discriminator hidden width
LOSS_WEIGHT = 1.0
NORM_MODE = "pixel"        # the module default

# Batch tiling: whole batch per tile at this toy size; use multiples of 8
# (128 recommended) once B is realistic so the (8,128) block rule holds.
TILE_B = B if B < 128 else 128
assert B % TILE_B == 0, "demo assumes B divisible by TILE_B"
NUM_B_TILES = B // TILE_B


# ---------------- Pallas kernel --------------------------------------------
def _gp_kernel(alpha_ref, real_ref, fake_ref, w1_ref, w1t_ref, v_ref, out_ref):
    bi = pl.program_id(0)

    @pl.when(bi == 0)
    def _init():
        out_ref[0] = 0.0

    real = real_ref[...]                                      # (TILE_B, D)
    fake = fake_ref[...]                                      # (TILE_B, D)
    alpha = alpha_ref[...]                                    # (TILE_B, 1)

    # fused interpolation: fake + alpha * (real - fake)
    x = fake + alpha * (real - fake)                          # (TILE_B, D)

    # discriminator forward hidden activations (MXU matmul)
    h = jnp.dot(x, w1_ref[...], preferred_element_type=jnp.float32)   # (TILE_B, HD)
    th = jnp.tanh(h)                                          # EUP

    # analytic backward: dD/dx = ((1 - tanh(h)^2) * v) @ W1^T
    # W1^T is supplied pre-transposed -> plain lane-dense matmul, no relayout.
    t = (1.0 - th * th) * v_ref[...]                          # (TILE_B, HD)
    g = jnp.dot(t, w1t_ref[...], preferred_element_type=jnp.float32)  # (TILE_B, D)

    # pixel-wise L2 norm over the channel dimension of the NCHW gradient
    # (static, lane-aligned slices of width HW -> pure VPU work)
    norm_sq = jnp.zeros((TILE_B, HW), jnp.float32)
    for c in range(C):
        gc = g[:, c * HW:(c + 1) * HW]
        norm_sq = norm_sq + gc * gc
    norm = jnp.sqrt(norm_sq)                                  # (TILE_B, HW)
    # NOTE: no epsilon inside sqrt (matches the reference forward); a backward
    # pass would need one to avoid inf at exactly-zero pixel gradients.

    # accumulate the un-normalized penalty across batch tiles
    out_ref[0] += jnp.sum((norm - 1.0) ** 2)

    @pl.when(bi == pl.num_programs(0) - 1)
    def _finalize():
        out_ref[0] = out_ref[0] * (LOSS_WEIGHT / float(B * HW))


# ---------------- wrapper ----------------------------------------------------
@jax.jit
def gradient_penalty_loss_pallas(real, fake, alpha, w1, w1t, v):
    """real/fake: (B,C,H,W) f32; alpha: (B,) f32; w1: (D,HD); w1t: (HD,D); v: (HD,)."""
    real2 = real.reshape(B, D).astype(jnp.float32)            # free reshape (view)
    fake2 = fake.reshape(B, D).astype(jnp.float32)
    alpha2 = alpha.reshape(B, 1).astype(jnp.float32)
    v2 = v.reshape(1, HD).astype(jnp.float32)
    w1f = w1.astype(jnp.float32)
    w1tf = w1t.astype(jnp.float32)

    grid_spec = pltpu.PrefetchScalarGridSpec(
        num_scalar_prefetch=0,
        grid=(NUM_B_TILES,),
        in_specs=[
            pl.BlockSpec((TILE_B, 1), lambda b: (b, 0)),      # alpha column (VMEM)
            pl.BlockSpec((TILE_B, D), lambda b: (b, 0)),      # real tile
            pl.BlockSpec((TILE_B, D), lambda b: (b, 0)),      # fake tile
            pl.BlockSpec((D, HD), lambda b: (0, 0)),          # W1   (VMEM-resident)
            pl.BlockSpec((HD, D), lambda b: (0, 0)),          # W1^T (VMEM-resident)
            pl.BlockSpec((1, HD), lambda b: (0, 0)),          # v
        ],
        out_specs=pl.BlockSpec(memory_space=pltpu.MemorySpace.SMEM),  # scalar loss
    )

    flops = 2 * (2 * B * D * HD)                  # two (B,D)x(D,HD)-sized matmuls
    bytes_accessed = (2 * B * D + 2 * D * HD + HD + B + 1) * 4

    out = pl.pallas_call(
        _gp_kernel,
        out_shape=jax.ShapeDtypeStruct((1,), jnp.float32),
        grid_spec=grid_spec,
        compiler_params=pltpu.CompilerParams(
            # batch axis accumulates into the scalar output -> "arbitrary";
            # switch to per-tile partial sums + "parallel" for v7x 2-TC sharding.
            dimension_semantics=("arbitrary",)),
        cost_estimate=pl.CostEstimate(
            flops=flops, transcendentals=B * HD, bytes_accessed=bytes_accessed),
    )(alpha2, real2, fake2, w1f, w1tf, v2)
    return out[0]


# ---------------- pure-JAX reference (uses autodiff) ------------------------
def _reference_loss(real, fake, alpha, w1, v):
    alpha4 = alpha.reshape(B, 1, 1, 1)
    interp = alpha4 * real + (1.0 - alpha4) * fake

    def disc_sum(x_img):
        x_flat = x_img.reshape(B, D)
        h = x_flat @ w1
        return jnp.sum(jnp.tanh(h) * v[None, :])   # == sum_b D(x_b)

    grads = jax.grad(disc_sum)(interp)              # (B, C, H, W)
    if NORM_MODE == "pixel":
        norm = jnp.sqrt(jnp.sum(grads * grads, axis=1))        # (B, H, W)
    else:  # 'HWC'
        norm = jnp.sqrt(jnp.sum(grads.reshape(B, -1) ** 2, axis=1))
    return jnp.mean((norm - 1.0) ** 2) * LOSS_WEIGHT


# ---------------- main -------------------------------------------------------
if __name__ == "__main__":
    key = jax.random.PRNGKey(0)
    k_real, k_fake, k_alpha, k_w1, k_v = jax.random.split(key, 5)

    real = jax.random.normal(k_real, (B, C, H, W), jnp.float32)
    fake = jax.random.normal(k_fake, (B, C, H, W), jnp.float32)
    alpha = jax.random.uniform(k_alpha, (B,), jnp.float32)     # torch.rand(B,1,1,1) analogue

    # deterministic synthetic discriminator weights (live here, with the model)
    w1 = jax.random.normal(k_w1, (D, HD), jnp.float32) * (1.0 / jnp.sqrt(D))
    v = jax.random.normal(k_v, (HD,), jnp.float32) * (1.0 / jnp.sqrt(HD))
    # W1^T is materialized ONCE alongside the weights (hoisted out of the
    # per-call path, per perf review) and reused by every loss call.
    w1t = jnp.asarray(w1.T)

    loss = gradient_penalty_loss_pallas(real, fake, alpha, w1, w1t, v)
    loss = jax.block_until_ready(loss)

    ref = jax.block_until_ready(_reference_loss(real, fake, alpha, w1, v))

    assert jnp.isfinite(loss), "kernel produced non-finite loss"
    assert jnp.allclose(loss, ref, rtol=1e-4, atol=1e-5), (loss, ref)

    print("KERNEL_OK")
</pallas_src>

<mosaic_0001>
module attributes {stable_mosaic.version = 11 : i64} {
  func.func @_gp_kernel(%arg0: i32, %arg1: memref<2x1xf32, #tpu.memory_space<vmem>>, %arg2: memref<2x1024xf32, #tpu.memory_space<vmem>>, %arg3: memref<2x1024xf32, #tpu.memory_space<vmem>>, %arg4: memref<1024x32xf32, #tpu.memory_space<vmem>>, %arg5: memref<32x1024xf32, #tpu.memory_space<vmem>>, %arg6: memref<1x32xf32, #tpu.memory_space<vmem>>, %arg7: memref<1xf32, #tpu.memory_space<smem>>) attributes {dimension_semantics = [#tpu.dimension_semantics<arbitrary>], iteration_bounds = array<i64: 1>, scalar_prefetch = 0 : i64, scratch_operands = 0 : i64, tpu.core_type = #tpu.core_type<tc>, window_params = [{transform_indices = @transform_0, window_bounds = array<i64: 2, 1>}, {transform_indices = @transform_1, window_bounds = array<i64: 2, 1024>}, {transform_indices = @transform_2, window_bounds = array<i64: 2, 1024>}, {pipeline_mode = #tpu.pipeline_mode<synchronous>, transform_indices = @transform_3, window_bounds = array<i64: 1024, 32>}, {pipeline_mode = #tpu.pipeline_mode<synchronous>, transform_indices = @transform_4, window_bounds = array<i64: 32, 1024>}, {pipeline_mode = #tpu.pipeline_mode<synchronous>, transform_indices = @transform_5, window_bounds = array<i64: 1, 32>}, {transform_indices = @transform_6, window_bounds = array<i64: 1>}]} {
    %c0_i32 = arith.constant 0 : i32
    %0 = arith.cmpi eq, %arg0, %c0_i32 : i32
    %1 = arith.extui %0 : i1 to i32
    %c0_i32_0 = arith.constant 0 : i32
    %2 = arith.cmpi ne, %1, %c0_i32_0 : i32
    scf.if %2 {
      %cst_21 = arith.constant 0.000000e+00 : f32
      %c0_22 = arith.constant 0 : index
      %48 = memref.load %arg7[%c0_22] : memref<1xf32, #tpu.memory_space<smem>>
      memref.store %cst_21, %arg7[%c0_22] : memref<1xf32, #tpu.memory_space<smem>>
    } else {
    }
    %c0 = arith.constant 0 : index
    %c0_1 = arith.constant 0 : index
    %3 = vector.load %arg2[%c0, %c0_1] : memref<2x1024xf32, #tpu.memory_space<vmem>>, vector<2x1024xf32>
    %c0_2 = arith.constant 0 : index
    %c0_3 = arith.constant 0 : index
    %4 = vector.load %arg3[%c0_2, %c0_3] : memref<2x1024xf32, #tpu.memory_space<vmem>>, vector<2x1024xf32>
    %c0_4 = arith.constant 0 : index
    %c0_5 = arith.constant 0 : index
    %5 = vector.load %arg1[%c0_4, %c0_5] : memref<2x1xf32, #tpu.memory_space<vmem>>, vector<2x1xf32>
    %6 = arith.subf %3, %4 : vector<2x1024xf32>
    %7 = vector.broadcast %5 : vector<2x1xf32> to vector<2x1024xf32>
    %8 = arith.mulf %7, %6 : vector<2x1024xf32>
    %9 = arith.addf %4, %8 : vector<2x1024xf32>
    %c0_6 = arith.constant 0 : index
    %c0_7 = arith.constant 0 : index
    %10 = vector.load %arg4[%c0_6, %c0_7] : memref<1024x32xf32, #tpu.memory_space<vmem>>, vector<1024x32xf32>
    %cst = arith.constant dense<0.000000e+00> : vector<2x32xf32>
    %11 = tpu.matmul %9, %10, %cst {dimension_numbers = #tpu.dot_dimension_numbers<[1], [0], [0], [1], [0, 0, 1, 1], [], []>} : vector<2x1024xf32>, vector<1024x32xf32>, vector<2x32xf32> -> vector<2x32xf32>
    %12 = math.tanh %11 : vector<2x32xf32>
    %13 = arith.mulf %12, %12 : vector<2x32xf32>
    %cst_8 = arith.constant 1.000000e+00 : f32
    %14 = vector.broadcast %cst_8 : f32 to vector<2x32xf32>
    %15 = arith.subf %14, %13 : vector<2x32xf32>
    %c0_9 = arith.constant 0 : index
    %c0_10 = arith.constant 0 : index
    %16 = vector.load %arg6[%c0_9, %c0_10] : memref<1x32xf32, #tpu.memory_space<vmem>>, vector<1x32xf32>
    %17 = vector.broadcast %16 : vector<1x32xf32> to vector<2x32xf32>
    %18 = arith.mulf %15, %17 : vector<2x32xf32>
    %c0_11 = arith.constant 0 : index
    %c0_12 = arith.constant 0 : index
    %19 = vector.load %arg5[%c0_11, %c0_12] : memref<32x1024xf32, #tpu.memory_space<vmem>>, vector<32x1024xf32>
    %cst_13 = arith.constant dense<0.000000e+00> : vector<2x1024xf32>
    %20 = tpu.matmul %18, %19, %cst_13 {dimension_numbers = #tpu.dot_dimension_numbers<[1], [0], [0], [1], [0, 0, 1, 1], [], []>} : vector<2x32xf32>, vector<32x1024xf32>, vector<2x1024xf32> -> vector<2x1024xf32>
    %cst_14 = arith.constant 0.000000e+00 : f32
    %21 = vector.broadcast %cst_14 : f32 to vector<2x256xf32>
    %22 = vector.extract_strided_slice %20 {offsets = [0, 0], sizes = [2, 256], strides = [1, 1]} : vector<2x1024xf32> to vector<2x256xf32>
    %23 = arith.mulf %22, %22 : vector<2x256xf32>
    %24 = arith.addf %21, %23 : vector<2x256xf32>
    %25 = vector.extract_strided_slice %20 {offsets = [0, 256], sizes = [2, 256], strides = [1, 1]} : vector<2x1024xf32> to vector<2x256xf32>
    %26 = arith.mulf %25, %25 : vector<2x256xf32>
    %27 = arith.addf %24, %26 : vector<2x256xf32>
    %28 = vector.extract_strided_slice %20 {offsets = [0, 512], sizes = [2, 256], strides = [1, 1]} : vector<2x1024xf32> to vector<2x256xf32>
    %29 = arith.mulf %28, %28 : vector<2x256xf32>
    %30 = arith.addf %27, %29 : vector<2x256xf32>
    %31 = vector.extract_strided_slice %20 {offsets = [0, 768], sizes = [2, 256], strides = [1, 1]} : vector<2x1024xf32> to vector<2x256xf32>
    %32 = arith.mulf %31, %31 : vector<2x256xf32>
    %33 = arith.addf %30, %32 : vector<2x256xf32>
    %34 = math.sqrt %33 : vector<2x256xf32>
    %c0_15 = arith.constant 0 : index
    %35 = memref.load %arg7[%c0_15] : memref<1xf32, #tpu.memory_space<smem>>
    %cst_16 = arith.constant 1.000000e+00 : f32
    %36 = vector.broadcast %cst_16 : f32 to vector<2x256xf32>
    %37 = arith.subf %34, %36 : vector<2x256xf32>
    %38 = arith.mulf %37, %37 : vector<2x256xf32>
    %39 = vector.shape_cast %38 : vector<2x256xf32> to vector<1x2x256xf32>
    %cst_17 = arith.constant dense<0.000000e+00> : vector<1xf32>
    %40 = vector.multi_reduction <add>, %39, %cst_17 [1, 2] : vector<1x2x256xf32> to vector<1xf32>
    %41 = vector.shape_cast %40 : vector<1xf32> to vector<1x1x1xf32>
    %42 = vector.extract %41[0, 0, 0] : f32 from vector<1x1x1xf32>
    %43 = arith.addf %35, %42 : f32
    %c0_18 = arith.constant 0 : index
    %44 = memref.load %arg7[%c0_18] : memref<1xf32, #tpu.memory_space<smem>>
    memref.store %43, %arg7[%c0_18] : memref<1xf32, #tpu.memory_space<smem>>
    %c0_i32_19 = arith.constant 0 : i32
    %45 = arith.cmpi eq, %arg0, %c0_i32_19 : i32
    %46 = arith.extui %45 : i1 to i32
    %c0_i32_20 = arith.constant 0 : i32
    %47 = arith.cmpi ne, %46, %c0_i32_20 : i32
    scf.if %47 {
      %c0_21 = arith.constant 0 : index
      %48 = memref.load %arg7[%c0_21] : memref<1xf32, #tpu.memory_space<smem>>
      %cst_22 = arith.constant 0.001953125 : f32
      %49 = arith.mulf %48, %cst_22 : f32
      %c0_23 = arith.constant 0 : index
      %50 = memref.load %arg7[%c0_23] : memref<1xf32, #tpu.memory_space<smem>>
      memref.store %49, %arg7[%c0_23] : memref<1xf32, #tpu.memory_space<smem>>
    } else {
    }
    return
  }
  func.func @transform_0(%arg0: i32) -> (i32, i32) {
    %c0_i32 = arith.constant 0 : i32
    %c0_i32_0 = arith.constant 0 : i32
    return %arg0, %c0_i32 : i32, i32
  }
  func.func @transform_1(%arg0: i32) -> (i32, i32) {
    %c0_i32 = arith.constant 0 : i32
    %c0_i32_0 = arith.constant 0 : i32
    return %arg0, %c0_i32 : i32, i32
  }
  func.func @transform_2(%arg0: i32) -> (i32, i32) {
    %c0_i32 = arith.constant 0 : i32
    %c0_i32_0 = arith.constant 0 : i32
    return %arg0, %c0_i32 : i32, i32
  }
  func.func @transform_3(%arg0: i32) -> (i32, i32) {
    %c0_i32 = arith.constant 0 : i32
    %c0_i32_0 = arith.constant 0 : i32
    %c0_i32_1 = arith.constant 0 : i32
    return %c0_i32, %c0_i32_0 : i32, i32
  }
  func.func @transform_4(%arg0: i32) -> (i32, i32) {
    %c0_i32 = arith.constant 0 : i32
    %c0_i32_0 = arith.constant 0 : i32
    %c0_i32_1 = arith.constant 0 : i32
    return %c0_i32, %c0_i32_0 : i32, i32
  }
  func.func @transform_5(%arg0: i32) -> (i32, i32) {
    %c0_i32 = arith.constant 0 : i32
    %c0_i32_0 = arith.constant 0 : i32
    %c0_i32_1 = arith.constant 0 : i32
    return %c0_i32, %c0_i32_0 : i32, i32
  }
  func.func @transform_6(%arg0: i32) -> i32 {
    %c0_i32 = arith.constant 0 : i32
    %c0_i32_0 = arith.constant 0 : i32
    return %c0_i32 : i32
  }
}

</mosaic_0001>

<llo_original>
// kernel: gradient_penalty_loss_pallas.1
$region0: #{gradient_penalty_loss_pallas.1}
  #allocation0 [shape = 'u32[]', space=smem, size = 0x4, offset = 0x4, fixed_abs, tag = 'smem constant byte address 0x4 - core index']
  #allocation1 [shape = 'u32[144,128]{1,0:T(1,128)}', space=vmem, size = 0x12000, scoped, tag = 'internal scratch']
  %s0 = inlined_call_operand.vmem [shape: f32[2,1], index: 0, kind: input, shape index: {}]
  %s1 = inlined_call_operand.vmem [shape: f32[2,1024], index: 1, kind: input, shape index: {}]
  %s2 = inlined_call_operand.vmem [shape: f32[2,1024], index: 2, kind: input, shape index: {}]
  %s3 = inlined_call_operand.vmem [shape: f32[1024,32], index: 3, kind: input, shape index: {}]
  %s4 = inlined_call_operand.vmem [shape: f32[32,1024], index: 4, kind: input, shape index: {}]
  %s5 = inlined_call_operand.vmem [shape: f32[1,32], index: 5, kind: input, shape index: {}]
  %s6 = inlined_call_operand.hbm [shape: f32[1], index: 6, kind: output, shape index: {}]
  %s7 = sld [smem:[#allocation0]]
  $region42: #{gradient_penalty_loss_pallas.1} parent=0
    _
  %s9 = ssub.s32 1, %s7
  %s10 = scalar_select 0, %s9, %s7
  $region1: #{gradient_penalty_loss_pallas.1} parent=0
    #allocation2 [shape = 'u8[512]{0}', space=smem, size = 0x200, scoped, tag = 'output window, operand 0, single buffered']
    #allocation3 [shape = 's32[1]{0}', space=sflag, size = 0x4, scoped, tag = 'scoped memory for gradient_penalty_loss_pallas.1']
    %11 = vsyncpa [#allocation3], 0
    // Predicated region
    $region2: #{gradient_penalty_loss_pallas.1} parent=1 // pred_check
      _
    $region3: #{gradient_penalty_loss_pallas.1} parent=1 // pred_check_branch
      %13 = sbr.rel (0) target = $region5
    $region4: #{gradient_penalty_loss_pallas.1} parent=1 // pred_region
      _
    $region5: #{gradient_penalty_loss_pallas.1} parent=1 // pred_fallthru
      _
    // Predicated region
    $region6: #{gradient_penalty_loss_pallas.1} parent=1 // pred_check
      _
    $region7: #{gradient_penalty_loss_pallas.1} parent=1 // pred_check_branch
      %15 = sbr.rel (0) target = $region9
    $region8: #{gradient_penalty_loss_pallas.1} parent=1 // pred_region
      _
    $region9: #{gradient_penalty_loss_pallas.1} parent=1 // pred_fallthru
      _
    // Predicated region
    $region10: #{gradient_penalty_loss_pallas.1} parent=1 // pred_check
      _
    $region11: #{gradient_penalty_loss_pallas.1} parent=1 // pred_check_branch
      %17 = sbr.rel (0) target = $region13
    $region12: #{gradient_penalty_loss_pallas.1} parent=1 // pred_region
      _
    $region13: #{gradient_penalty_loss_pallas.1} parent=1 // pred_fallthru
      _
    // Predicated region
    $region14: #{gradient_penalty_loss_pallas.1} parent=1 // pred_check
      _
    $region15: #{gradient_penalty_loss_pallas.1} parent=1 // pred_check_branch
      %19 = sbr.rel (0) target = $region17
    $region16: #{gradient_penalty_loss_pallas.1} parent=1 // pred_region
      _
    $region17: #{gradient_penalty_loss_pallas.1} parent=1 // pred_fallthru
      _
    // Predicated region
    $region18: #{gradient_penalty_loss_pallas.1} parent=1 // pred_check
      _
    $region19: #{gradient_penalty_loss_pallas.1} parent=1 // pred_check_branch
      %21 = sbr.rel (0) target = $region21
    $region20: #{gradient_penalty_loss_pallas.1} parent=1 // pred_region
      _
    $region21: #{gradient_penalty_loss_pallas.1} parent=1 // pred_fallthru
      _
    // Predicated region
    $region22: #{gradient_penalty_loss_pallas.1} parent=1 // pred_check
      _
    $region23: #{gradient_penalty_loss_pallas.1} parent=1 // pred_check_branch
      %23 = sbr.rel (0) target = $region25
    $region24: #{gradient_penalty_loss_pallas.1} parent=1 // pred_region
      _
    $region25: #{gradient_penalty_loss_pallas.1} parent=1 // pred_fallthru
      _
    %p24 = scmp.eq.s32.totalorder 0, 0
    // Predicated region
    $region26: #{gradient_penalty_loss_pallas.1} parent=1 // pred_check
      %p25 = pneg %p24
    $region27: #{gradient_penalty_loss_pallas.1} parent=1 // pred_check_branch
      %27 = sbr.rel (%p25) target = $region29
    $region28: #{gradient_penalty_loss_pallas.1} parent=1 // pred_region
      %s28 = scalar_lea.smem [#allocation2], 0
      %29 = sst [smem:[%s28]] 0.0
    $region29: #{gradient_penalty_loss_pallas.1} parent=1 // pred_fallthru
      _
    %v30 = vld [vmem:[%s1] sm:$0xff]
    %v31 = vld [vmem:[%s1 + $0x8] sm:$0xff]
    %v32 = vld [vmem:[%s2] sm:$0xff]
    %v33 = vld [vmem:[%s2 + $0x8] sm:$0xff]
    %v34 = vld [vmem:[%s0] sm:$0x3]
    %v35 = vsub.f32 %v30, %v32
    %v36 = vsub.f32 %v31, %v33
    %38 = vset.pattern.permute.xlu0 0
    %39 = vperm.xlu0 %38, %v34
    %v40 = vpop.permute.xlu0 %39
    %v44 = vcombine.high %v35, %v35
    %v46 = vunpack.c.l.s4 1983009808
    %v47 = vunpack.c.0.s8 %v46
    %v48 = vlaneseq
    %v49 = vshrl.u32 %v48, 7
    %v50 = vsub.s32 %v47, %v49
    %v51 = vrot.slane %v35, %v50
    %v53 = vunpack.c.l.s4 1983009808
    %v54 = vunpack.c.0.s8 %v53
    %v55 = vlaneseq
    %v56 = vshrl.u32 %v55, 7
    %v57 = vsub.s32 %v54, %v56
    %v58 = vrot.slane %v44, %v57
    %v59 = vcombine.high %v51, %v51
    %v60 = vcombine.high %v58, %v58
    %v61 = vcombine.high %v36, %v36
    %v63 = vunpack.c.l.s4 1983009808
    %v64 = vunpack.c.0.s8 %v63
    %v65 = vlaneseq
    %v66 = vshrl.u32 %v65, 7
    %v67 = vsub.s32 %v64, %v66
    %v68 = vrot.slane %v36, %v67
    %v70 = vunpack.c.l.s4 1983009808
    %v71 = vunpack.c.0.s8 %v70
    %v72 = vlaneseq
    %v73 = vshrl.u32 %v72, 7
    %v74 = vsub.s32 %v71, %v73
    %v75 = vrot.slane %v61, %v74
    %v76 = vcombine.high %v68, %v68
    %v77 = vcombine.high %v75, %v75
    %v86 = vmul.f32 %v40, %v51
    %v87 = vmul.f32 %v40, %v59
    %v88 = vmul.f32 %v40, %v58
    %v89 = vmul.f32 %v40, %v60
    %v90 = vmul.f32 %v40, %v68
    %v91 = vmul.f32 %v40, %v76
    %v92 = vmul.f32 %v40, %v75
    %v93 = vmul.f32 %v40, %v77
    %v102 = vcombine.low %v86, %v87
    %v103 = vcombine.low %v88, %v89
    %v105 = vunpack.c.l.s4 1983009808
    %v106 = vunpack.c.0.s8 %v105
    %v107 = vlaneseq
    %v108 = vshrl.u32 %v107, 7
    %v109 = vsub.s32 %v106, %v108
    %v110 = vrot.slane %v102, %v109
    %v112 = vunpack.c.l.s4 1983009808
    %v113 = vunpack.c.0.s8 %v112
    %v114 = vlaneseq
    %v115 = vshrl.u32 %v114, 7
    %v116 = vsub.s32 %v113, %v115
    %v117 = vrot.slane %v103, %v116
    %v118 = vcombine.low %v110, %v117
    %v119 = vcombine.low %v90, %v91
    %v120 = vcombine.low %v92, %v93
    %v122 = vunpack.c.l.s4 1983009808
    %v123 = vunpack.c.0.s8 %v122
    %v124 = vlaneseq
    %v125 = vshrl.u32 %v124, 7
    %v126 = vsub.s32 %v123, %v125
    %v127 = vrot.slane %v119, %v126
    %v129 = vunpack.c.l.s4 1983009808
    %v130 = vunpack.c.0.s8 %v129
    %v131 = vlaneseq
    %v132 = vshrl.u32 %v131, 7
    %v133 = vsub.s32 %v130, %v132
    %v134 = vrot.slane %v120, %v133
    %v135 = vcombine.low %v127, %v134
    %v138 = vadd.f32 %v32, %v118
    %v139 = vadd.f32 %v33, %v135
    %v140 = vld [vmem:[%s3] sm:$0xff]
    %v141 = vld [vmem:[%s3 + $0x8] sm:$0xff]
    %v142 = vld [vmem:[%s3 + $0x10] sm:$0xff]
    %v143 = vld [vmem:[%s3 + $0x18] sm:$0xff]
    %v144 = vld [vmem:[%s3 + $0x20] sm:$0xff]
    %v145 = vld [vmem:[%s3 + $0x28] sm:$0xff]
    %v146 = vld [vmem:[%s3 + $0x30] sm:$0xff]
    %v147 = vld [vmem:[%s3 + $0x38] sm:$0xff]
    %v148 = vld [vmem:[%s3 + $0x40] sm:$0xff]
    %v149 = vld [vmem:[%s3 + $0x48] sm:$0xff]
    %v150 = vld [vmem:[%s3 + $0x50] sm:$0xff]
    %v151 = vld [vmem:[%s3 + $0x58] sm:$0xff]
    %v152 = vld [vmem:[%s3 + $0x60] sm:$0xff]
    %v153 = vld [vmem:[%s3 + $0x68] sm:$0xff]
    %v154 = vld [vmem:[%s3 + $0x70] sm:$0xff]
    %v155 = vld [vmem:[%s3 + $0x78] sm:$0xff]
    %v156 = vld [vmem:[%s3 + $0x80] sm:$0xff]
    %v157 = vld [vmem:[%s3 + $0x88] sm:$0xff]
    %v158 = vld [vmem:[%s3 + $0x90] sm:$0xff]
    %v159 = vld [vmem:[%s3 + $0x98] sm:$0xff]
    %v160 = vld [vmem:[%s3 + $0xa0] sm:$0xff]
    %v161 = vld [vmem:[%s3 + $0xa8] sm:$0xff]
    %v162 = vld [vmem:[%s3 + $0xb0] sm:$0xff]
    %v163 = vld [vmem:[%s3 + $0xb8] sm:$0xff]
    %v164 = vld [vmem:[%s3 + $0xc0] sm:$0xff]
    %v165 = vld [vmem:[%s3 + $0xc8] sm:$0xff]
    %v166 = vld [vmem:[%s3 + $0xd0] sm:$0xff]
    %v167 = vld [vmem:[%s3 + $0xd8] sm:$0xff]
    %v168 = vld [vmem:[%s3 + $0xe0] sm:$0xff]
    %v169 = vld [vmem:[%s3 + $0xe8] sm:$0xff]
    %v170 = vld [vmem:[%s3 + $0xf0] sm:$0xff]
    %v171 = vld [vmem:[%s3 + $0xf8] sm:$0xff]
    %v172 = vld [vmem:[%s3 + $0x100] sm:$0xff]
    %v173 = vld [vmem:[%s3 + $0x108] sm:$0xff]
    %v174 = vld [vmem:[%s3 + $0x110] sm:$0xff]
    %v175 = vld [vmem:[%s3 + $0x118] sm:$0xff]
    %v176 = vld [vmem:[%s3 + $0x120] sm:$0xff]
    %v177 = vld [vmem:[%s3 + $0x128] sm:$0xff]
    %v178 = vld [vmem:[%s3 + $0x130] sm:$0xff]
    %v179 = vld [vmem:[%s3 + $0x138] sm:$0xff]
    %v180 = vld [vmem:[%s3 + $0x140] sm:$0xff]
    %v181 = vld [vmem:[%s3 + $0x148] sm:$0xff]
    %v182 = vld [vmem:[%s3 + $0x150] sm:$0xff]
    %v183 = vld [vmem:[%s3 + $0x158] sm:$0xff]
    %v184 = vld [vmem:[%s3 + $0x160] sm:$0xff]
    %v185 = vld [vmem:[%s3 + $0x168] sm:$0xff]
    %v186 = vld [vmem:[%s3 + $0x170] sm:$0xff]
    %v187 = vld [vmem:[%s3 + $0x178] sm:$0xff]
    %v188 = vld [vmem:[%s3 + $0x180] sm:$0xff]
    %v189 = vld [vmem:[%s3 + $0x188] sm:$0xff]
    %v190 = vld [vmem:[%s3 + $0x190] sm:$0xff]
    %v191 = vld [vmem:[%s3 + $0x198] sm:$0xff]
    %v192 = vld [vmem:[%s3 + $0x1a0] sm:$0xff]
    %v193 = vld [vmem:[%s3 + $0x1a8] sm:$0xff]
    %v194 = vld [vmem:[%s3 + $0x1b0] sm:$0xff]
    %v195 = vld [vmem:[%s3 + $0x1b8] sm:$0xff]
    %v196 = vld [vmem:[%s3 + $0x1c0] sm:$0xff]
    %v197 = vld [vmem:[%s3 + $0x1c8] sm:$0xff]
    %v198 = vld [vmem:[%s3 + $0x1d0] sm:$0xff]
    %v199 = vld [vmem:[%s3 + $0x1d8] sm:$0xff]
    %v200 = vld [vmem:[%s3 + $0x1e0] sm:$0xff]
    %v201 = vld [vmem:[%s3 + $0x1e8] sm:$0xff]
    %v202 = vld [vmem:[%s3 + $0x1f0] sm:$0xff]
    %v203 = vld [vmem:[%s3 + $0x1f8] sm:$0xff]
    %v204 = vld [vmem:[%s3 + $0x200] sm:$0xff]
    %v205 = vld [vmem:[%s3 + $0x208] sm:$0xff]
    %v206 = vld [vmem:[%s3 + $0x210] sm:$0xff]
    %v207 = vld [vmem:[%s3 + $0x218] sm:$0xff]
    %v208 = vld [vmem:[%s3 + $0x220] sm:$0xff]
    %v209 = vld [vmem:[%s3 + $0x228] sm:$0xff]
    %v210 = vld [vmem:[%s3 + $0x230] sm:$0xff]
    %v211 = vld [vmem:[%s3 + $0x238] sm:$0xff]
    %v212 = vld [vmem:[%s3 + $0x240] sm:$0xff]
    %v213 = vld [vmem:[%s3 + $0x248] sm:$0xff]
    %v214 = vld [vmem:[%s3 + $0x250] sm:$0xff]
    %v215 = vld [vmem:[%s3 + $0x258] sm:$0xff]
    %v216 = vld [vmem:[%s3 + $0x260] sm:$0xff]
    %v217 = vld [vmem:[%s3 + $0x268] sm:$0xff]
    %v218 = vld [vmem:[%s3 + $0x270] sm:$0xff]
    %v219 = vld [vmem:[%s3 + $0x278] sm:$0xff]
    %v220 = vld [vmem:[%s3 + $0x280] sm:$0xff]
    %v221 = vld [vmem:[%s3 + $0x288] sm:$0xff]
    %v222 = vld [vmem:[%s3 + $0x290] sm:$0xff]
    %v223 = vld [vmem:[%s3 + $0x298] sm:$0xff]
    %v224 = vld [vmem:[%s3 + $0x2a0] sm:$0xff]
    %v225 = vld [vmem:[%s3 + $0x2a8] sm:$0xff]
    %v226 = vld [vmem:[%s3 + $0x2b0] sm:$0xff]
    %v227 = vld [vmem:[%s3 + $0x2b8] sm:$0xff]
    %v228 = vld [vmem:[%s3 + $0x2c0] sm:$0xff]
    %v229 = vld [vmem:[%s3 + $0x2c8] sm:$0xff]
    %v230 = vld [vmem:[%s3 + $0x2d0] sm:$0xff]
    %v231 = vld [vmem:[%s3 + $0x2d8] sm:$0xff]
    %v232 = vld [vmem:[%s3 + $0x2e0] sm:$0xff]
    %v233 = vld [vmem:[%s3 + $0x2e8] sm:$0xff]
    %v234 = vld [vmem:[%s3 + $0x2f0] sm:$0xff]
    %v235 = vld [vmem:[%s3 + $0x2f8] sm:$0xff]
    %v236 = vld [vmem:[%s3 + $0x300] sm:$0xff]
    %v237 = vld [vmem:[%s3 + $0x308] sm:$0xff]
    %v238 = vld [vmem:[%s3 + $0x310] sm:$0xff]
    %v239 = vld [vmem:[%s3 + $0x318] sm:$0xff]
    %v240 = vld [vmem:[%s3 + $0x320] sm:$0xff]
    %v241 = vld [vmem:[%s3 + $0x328] sm:$0xff]
    %v242 = vld [vmem:[%s3 + $0x330] sm:$0xff]
    %v243 = vld [vmem:[%s3 + $0x338] sm:$0xff]
    %v244 = vld [vmem:[%s3 + $0x340] sm:$0xff]
    %v245 = vld [vmem:[%s3 + $0x348] sm:$0xff]
    %v246 = vld [vmem:[%s3 + $0x350] sm:$0xff]
    %v247 = vld [vmem:[%s3 + $0x358] sm:$0xff]
    %v248 = vld [vmem:[%s3 + $0x360] sm:$0xff]
    %v249 = vld [vmem:[%s3 + $0x368] sm:$0xff]
    %v250 = vld [vmem:[%s3 + $0x370] sm:$0xff]
    %v251 = vld [vmem:[%s3 + $0x378] sm:$0xff]
    %v252 = vld [vmem:[%s3 + $0x380] sm:$0xff]
    %v253 = vld [vmem:[%s3 + $0x388] sm:$0xff]
    %v254 = vld [vmem:[%s3 + $0x390] sm:$0xff]
    %v255 = vld [vmem:[%s3 + $0x398] sm:$0xff]
    %v256 = vld [vmem:[%s3 + $0x3a0] sm:$0xff]
    %v257 = vld [vmem:[%s3 + $0x3a8] sm:$0xff]
    %v258 = vld [vmem:[%s3 + $0x3b0] sm:$0xff]
    %v259 = vld [vmem:[%s3 + $0x3b8] sm:$0xff]
    %v260 = vld [vmem:[%s3 + $0x3c0] sm:$0xff]
    %v261 = vld [vmem:[%s3 + $0x3c8] sm:$0xff]
    %v262 = vld [vmem:[%s3 + $0x3d0] sm:$0xff]
    %v263 = vld [vmem:[%s3 + $0x3d8] sm:$0xff]
    %v264 = vld [vmem:[%s3 + $0x3e0] sm:$0xff]
    %v265 = vld [vmem:[%s3 + $0x3e8] sm:$0xff]
    %v266 = vld [vmem:[%s3 + $0x3f0] sm:$0xff]
    %v267 = vld [vmem:[%s3 + $0x3f8] sm:$0xff]
    %v270 = vcombine.high %v138, %v138
    %v272 = vunpack.c.l.s4 1983009808
    %v273 = vunpack.c.0.s8 %v272
    %v274 = vlaneseq
    %v275 = vshrl.u32 %v274, 7
    %v276 = vsub.s32 %v273, %v275
    %v277 = vrot.slane %v138, %v276
    %v279 = vunpack.c.l.s4 1983009808
    %v280 = vunpack.c.0.s8 %v279
    %v281 = vlaneseq
    %v282 = vshrl.u32 %v281, 7
    %v283 = vsub.s32 %v280, %v282
    %v284 = vrot.slane %v270, %v283
    %v285 = vcombine.high %v277, %v277
    %v286 = vcombine.high %v284, %v284
    %v287 = vcombine.high %v139, %v139
    %v289 = vunpack.c.l.s4 1983009808
    %v290 = vunpack.c.0.s8 %v289
    %v291 = vlaneseq
    %v292 = vshrl.u32 %v291, 7
    %v293 = vsub.s32 %v290, %v292
    %v294 = vrot.slane %v139, %v293
    %v296 = vunpack.c.l.s4 1983009808
    %v297 = vunpack.c.0.s8 %v296
    %v298 = vlaneseq
    %v299 = vshrl.u32 %v298, 7
    %v300 = vsub.s32 %v297, %v299
    %v301 = vrot.slane %v287, %v300
    %v302 = vcombine.high %v294, %v294
    %v303 = vcombine.high %v301, %v301
    %312 = vmatprep.subr.mxu0 0.0
    %313 = vmatpush1.msra.mxu0 %v140
    %314 = vmatprep.subr.mxu0 0.0
    %315 = vmatpush1.msra.mxu0 %v141
    %316 = vmatprep.subr.mxu0 0.0
    %317 = vmatpush1.msra.mxu0 %v142
    %318 = vmatprep.subr.mxu0 0.0
    %319 = vmatpush1.msra.mxu0 %v143
    %320 = vmatprep.subr.mxu0 0.0
    %321 = vmatpush1.msra.mxu0 %v144
    %322 = vmatprep.subr.mxu0 0.0
    %323 = vmatpush1.msra.mxu0 %v145
    %324 = vmatprep.subr.mxu0 0.0
    %325 = vmatpush1.msra.mxu0 %v146
    %326 = vmatprep.subr.mxu0 0.0
    %327 = vmatpush1.msra.mxu0 %v147
    %328 = vmatprep.subr.mxu0 0.0
    %329 = vmatpush1.msra.mxu0 %v148
    %330 = vmatprep.subr.mxu0 0.0
    %331 = vmatpush1.msra.mxu0 %v149
    %332 = vmatprep.subr.mxu0 0.0
    %333 = vmatpush1.msra.mxu0 %v150
    %334 = vmatprep.subr.mxu0 0.0
    %335 = vmatpush1.msra.mxu0 %v151
    %336 = vmatprep.subr.mxu0 0.0
    %337 = vmatpush1.msra.mxu0 %v152
    %338 = vmatprep.subr.mxu0 0.0
    %339 = vmatpush1.msra.mxu0 %v153
    %340 = vmatprep.subr.mxu0 0.0
    %341 = vmatpush1.msra.mxu0 %v154
    %342 = vmatprep.subr.mxu0 0.0
    %343 = vmatpush1.msra.mxu0 %v155
    %344 = vmatprep.subr.mxu0 0.0
    %345 = vmatpush1.msra.mxu0 %v156
    %346 = vmatprep.subr.mxu0 0.0
    %347 = vmatpush1.msra.mxu0 %v157
    %348 = vmatprep.subr.mxu0 0.0
    %349 = vmatpush1.msra.mxu0 %v158
    %350 = vmatprep.subr.mxu0 0.0
    %351 = vmatpush1.msra.mxu0 %v159
    %352 = vmatprep.subr.mxu0 0.0
    %353 = vmatpush1.msra.mxu0 %v160
    %354 = vmatprep.subr.mxu0 0.0
    %355 = vmatpush1.msra.mxu0 %v161
    %356 = vmatprep.subr.mxu0 0.0
    %357 = vmatpush1.msra.mxu0 %v162
    %358 = vmatprep.subr.mxu0 0.0
    %359 = vmatpush1.msra.mxu0 %v163
    %360 = vmatprep.subr.mxu0 0.0
    %361 = vmatpush1.msra.mxu0 %v164
    %362 = vmatprep.subr.mxu0 0.0
    %363 = vmatpush1.msra.mxu0 %v165
    %364 = vmatprep.subr.mxu0 0.0
    %365 = vmatpush1.msra.mxu0 %v166
    %366 = vmatprep.subr.mxu0 0.0
    %367 = vmatpush1.msra.mxu0 %v167
    %368 = vmatprep.subr.mxu0 0.0
    %369 = vmatpush1.msra.mxu0 %v168
    %370 = vmatprep.subr.mxu0 0.0
    %371 = vmatpush1.msra.mxu0 %v169
    %372 = vmatprep.subr.mxu0 0.0
    %373 = vmatpush1.msra.mxu0 %v170
    %374 = vmatprep.subr.mxu0 0.0
    %375 = vmatpush1.msra.mxu0 %v171
    %376 = vmatprep.mubr.f32.mxu0 %v285
    %377 = vmatmul.mubr.f32.gmra.mrb[0].mxu0 %v277
    %v378 = vpop.f32.mrb[0].mxu0
    %v379 = vadd.f32 0.0, %v378
    %v380 = vpop.f32.mrb[0].mxu0
    %381 = vdwg.mxu0
    %382 = vmatprep.subr.mxu0 0.0
    %383 = vmatpush1.msra.mxu0 %v172
    %384 = vmatprep.subr.mxu0 0.0
    %385 = vmatpush1.msra.mxu0 %v173
    %386 = vmatprep.subr.mxu0 0.0
    %387 = vmatpush1.msra.mxu0 %v174
    %388 = vmatprep.subr.mxu0 0.0
    %389 = vmatpush1.msra.mxu0 %v175
    %390 = vmatprep.subr.mxu0 0.0
    %391 = vmatpush1.msra.mxu0 %v176
    %392 = vmatprep.subr.mxu0 0.0
    %393 = vmatpush1.msra.mxu0 %v177
    %394 = vmatprep.subr.mxu0 0.0
    %395 = vmatpush1.msra.mxu0 %v178
    %396 = vmatprep.subr.mxu0 0.0
    %397 = vmatpush1.msra.mxu0 %v179
    %398 = vmatprep.subr.mxu0 0.0
    %399 = vmatpush1.msra.mxu0 %v180
    %400 = vmatprep.subr.mxu0 0.0
    %401 = vmatpush1.msra.mxu0 %v181
    %402 = vmatprep.subr.mxu0 0.0
    %403 = vmatpush1.msra.mxu0 %v182
    %404 = vmatprep.subr.mxu0 0.0
    %405 = vmatpush1.msra.mxu0 %v183
    %406 = vmatprep.subr.mxu0 0.0
    %407 = vmatpush1.msra.mxu0 %v184
    %408 = vmatprep.subr.mxu0 0.0
    %409 = vmatpush1.msra.mxu0 %v185
    %410 = vmatprep.subr.mxu0 0.0
    %411 = vmatpush1.msra.mxu0 %v186
    %412 = vmatprep.subr.mxu0 0.0
    %413 = vmatpush1.msra.mxu0 %v187
    %414 = vmatprep.subr.mxu0 0.0
    %415 = vmatpush1.msra.mxu0 %v188
    %416 = vmatprep.subr.mxu0 0.0
    %417 = vmatpush1.msra.mxu0 %v189
    %418 = vmatprep.subr.mxu0 0.0
    %419 = vmatpush1.msra.mxu0 %v190
    %420 = vmatprep.subr.mxu0 0.0
    %421 = vmatpush1.msra.mxu0 %v191
    %422 = vmatprep.subr.mxu0 0.0
    %423 = vmatpush1.msra.mxu0 %v192
    %424 = vmatprep.subr.mxu0 0.0
    %425 = vmatpush1.msra.mxu0 %v193
    %426 = vmatprep.subr.mxu0 0.0
    %427 = vmatpush1.msra.mxu0 %v194
    %428 = vmatprep.subr.mxu0 0.0
    %429 = vmatpush1.msra.mxu0 %v195
    %430 = vmatprep.subr.mxu0 0.0
    %431 = vmatpush1.msra.mxu0 %v196
    %432 = vmatprep.subr.mxu0 0.0
    %433 = vmatpush1.msra.mxu0 %v197
    %434 = vmatprep.subr.mxu0 0.0
    %435 = vmatpush1.msra.mxu0 %v198
    %436 = vmatprep.subr.mxu0 0.0
    %437 = vmatpush1.msra.mxu0 %v199
    %438 = vmatprep.subr.mxu0 0.0
    %439 = vmatpush1.msra.mxu0 %v200
    %440 = vmatprep.subr.mxu0 0.0
    %441 = vmatpush1.msra.mxu0 %v201
    %442 = vmatprep.subr.mxu0 0.0
    %443 = vmatpush1.msra.mxu0 %v202
    %444 = vmatprep.subr.mxu0 0.0
    %445 = vmatpush1.msra.mxu0 %v203
    %446 = vmatprep.mubr.f32.mxu0 %v286
    %447 = vmatmul.mubr.f32.gmra.mrb[0].mxu0 %v284
    %v448 = vpop.f32.mrb[0].mxu0
    %v449 = vadd.f32 %v379, %v448
    %v450 = vpop.f32.mrb[0].mxu0
    %451 = vdwg.mxu0
    %452 = vmatprep.subr.mxu0 0.0
    %453 = vmatpush1.msra.mxu0 %v204
    %454 = vmatprep.subr.mxu0 0.0
    %455 = vmatpush1.msra.mxu0 %v205
    %456 = vmatprep.subr.mxu0 0.0
    %457 = vmatpush1.msra.mxu0 %v206
    %458 = vmatprep.subr.mxu0 0.0
    %459 = vmatpush1.msra.mxu0 %v207
    %460 = vmatprep.subr.mxu0 0.0
    %461 = vmatpush1.msra.mxu0 %v208
    %462 = vmatprep.subr.mxu0 0.0
    %463 = vmatpush1.msra.mxu0 %v209
    %464 = vmatprep.subr.mxu0 0.0
    %465 = vmatpush1.msra.mxu0 %v210
    %466 = vmatprep.subr.mxu0 0.0
    %467 = vmatpush1.msra.mxu0 %v211
    %468 = vmatprep.subr.mxu0 0.0
    %469 = vmatpush1.msra.mxu0 %v212
    %470 = vmatprep.subr.mxu0 0.0
    %471 = vmatpush1.msra.mxu0 %v213
    %472 = vmatprep.subr.mxu0 0.0
    %473 = vmatpush1.msra.mxu0 %v214
    %474 = vmatprep.subr.mxu0 0.0
    %475 = vmatpush1.msra.mxu0 %v215
    %476 = vmatprep.subr.mxu0 0.0
    %477 = vmatpush1.msra.mxu0 %v216
    %478 = vmatprep.subr.mxu0 0.0
    %479 = vmatpush1.msra.mxu0 %v217
    %480 = vmatprep.subr.mxu0 0.0
    %481 = vmatpush1.msra.mxu0 %v218
    %482 = vmatprep.subr.mxu0 0.0
    %483 = vmatpush1.msra.mxu0 %v219
    %484 = vmatprep.subr.mxu0 0.0
    %485 = vmatpush1.msra.mxu0 %v220
    %486 = vmatprep.subr.mxu0 0.0
    %487 = vmatpush1.msra.mxu0 %v221
    %488 = vmatprep.subr.mxu0 0.0
    %489 = vmatpush1.msra.mxu0 %v222
    %490 = vmatprep.subr.mxu0 0.0
    %491 = vmatpush1.msra.mxu0 %v223
    %492 = vmatprep.subr.mxu0 0.0
    %493 = vmatpush1.msra.mxu0 %v224
    %494 = vmatprep.subr.mxu0 0.0
    %495 = vmatpush1.msra.mxu0 %v225
    %496 = vmatprep.subr.mxu0 0.0
    %497 = vmatpush1.msra.mxu0 %v226
    %498 = vmatprep.subr.mxu0 0.0
    %499 = vmatpush1.msra.mxu0 %v227
    %500 = vmatprep.subr.mxu0 0.0
    %501 = vmatpush1.msra.mxu0 %v228
    %502 = vmatprep.subr.mxu0 0.0
    %503 = vmatpush1.msra.mxu0 %v229
    %504 = vmatprep.subr.mxu0 0.0
    %505 = vmatpush1.msra.mxu0 %v230
    %506 = vmatprep.subr.mxu0 0.0
    %507 = vmatpush1.msra.mxu0 %v231
    %508 = vmatprep.subr.mxu0 0.0
    %509 = vmatpush1.msra.mxu0 %v232
    %510 = vmatprep.subr.mxu0 0.0
    %511 = vmatpush1.msra.mxu0 %v233
    %512 = vmatprep.subr.mxu0 0.0
    %513 = vmatpush1.msra.mxu0 %v234
    %514 = vmatprep.subr.mxu0 0.0
    %515 = vmatpush1.msra.mxu0 %v235
    %516 = vmatprep.mubr.f32.mxu0 %v302
    %517 = vmatmul.mubr.f32.gmra.mrb[0].mxu0 %v294
    %v518 = vpop.f32.mrb[0].mxu0
    %v519 = vadd.f32 %v449, %v518
    %v520 = vpop.f32.mrb[0].mxu0
    %521 = vdwg.mxu0
    %522 = vmatprep.subr.mxu0 0.0
    %523 = vmatpush1.msra.mxu0 %v236
    %524 = vmatprep.subr.mxu0 0.0
    %525 = vmatpush1.msra.mxu0 %v237
    %526 = vmatprep.subr.mxu0 0.0
    %527 = vmatpush1.msra.mxu0 %v238
    %528 = vmatprep.subr.mxu0 0.0
    %529 = vmatpush1.msra.mxu0 %v239
    %530 = vmatprep.subr.mxu0 0.0
    %531 = vmatpush1.msra.mxu0 %v240
    %532 = vmatprep.subr.mxu0 0.0
    %533 = vmatpush1.msra.mxu0 %v241
    %534 = vmatprep.subr.mxu0 0.0
    %535 = vmatpush1.msra.mxu0 %v242
    %536 = vmatprep.subr.mxu0 0.0
    %537 = vmatpush1.msra.mxu0 %v243
    %538 = vmatprep.subr.mxu0 0.0
    %539 = vmatpush1.msra.mxu0 %v244
    %540 = vmatprep.subr.mxu0 0.0
    %541 = vmatpush1.msra.mxu0 %v245
    %542 = vmatprep.subr.mxu0 0.0
    %543 = vmatpush1.msra.mxu0 %v246
    %544 = vmatprep.subr.mxu0 0.0
    %545 = vmatpush1.msra.mxu0 %v247
    %546 = vmatprep.subr.mxu0 0.0
    %547 = vmatpush1.msra.mxu0 %v248
    %548 = vmatprep.subr.mxu0 0.0
    %549 = vmatpush1.msra.mxu0 %v249
    %550 = vmatprep.subr.mxu0 0.0
    %551 = vmatpush1.msra.mxu0 %v250
    %552 = vmatprep.subr.mxu0 0.0
    %553 = vmatpush1.msra.mxu0 %v251
    %554 = vmatprep.subr.mxu0 0.0
    %555 = vmatpush1.msra.mxu0 %v252
    %556 = vmatprep.subr.mxu0 0.0
    %557 = vmatpush1.msra.mxu0 %v253
    %558 = vmatprep.subr.mxu0 0.0
    %559 = vmatpush1.msra.mxu0 %v254
    %560 = vmatprep.subr.mxu0 0.0
    %561 = vmatpush1.msra.mxu0 %v255
    %562 = vmatprep.subr.mxu0 0.0
    %563 = vmatpush1.msra.mxu0 %v256
    %564 = vmatprep.subr.mxu0 0.0
    %565 = vmatpush1.msra.mxu0 %v257
    %566 = vmatprep.subr.mxu0 0.0
    %567 = vmatpush1.msra.mxu0 %v258
    %568 = vmatprep.subr.mxu0 0.0
    %569 = vmatpush1.msra.mxu0 %v259
    %570 = vmatprep.subr.mxu0 0.0
    %571 = vmatpush1.msra.mxu0 %v260
    %572 = vmatprep.subr.mxu0 0.0
    %573 = vmatpush1.msra.mxu0 %v261
    %574 = vmatprep.subr.mxu0 0.0
    %575 = vmatpush1.msra.mxu0 %v262
    %576 = vmatprep.subr.mxu0 0.0
    %577 = vmatpush1.msra.mxu0 %v263
    %578 = vmatprep.subr.mxu0 0.0
    %579 = vmatpush1.msra.mxu0 %v264
    %580 = vmatprep.subr.mxu0 0.0
    %581 = vmatpush1.msra.mxu0 %v265
    %582 = vmatprep.subr.mxu0 0.0
    %583 = vmatpush1.msra.mxu0 %v266
    %584 = vmatprep.subr.mxu0 0.0
    %585 = vmatpush1.msra.mxu0 %v267
    %586 = vmatprep.mubr.f32.mxu0 %v303
    %587 = vmatmul.mubr.f32.gmra.mrb[0].mxu0 %v301
    %v588 = vpop.f32.mrb[0].mxu0
    %v589 = vadd.f32 %v519, %v588
    %v590 = vpop.f32.mrb[0].mxu0
    %591 = vdwg.mxu0
    %v592 = vtanh.pop %v589
    %v593 = vmul.f32 %v592, %v592
    %v594 = vsub.f32 1.0, %v593
    %v595 = vld [vmem:[%s5] sm:$0x1]
    %v597 = vlaneseq
    %v598 = vshrl.u32 %v597, 7
    %v599 = vsub.s32 0, %v598
    %v600 = vrot.slane %v595, %v599
    %v602 = vmul.f32 %v594, %v600
    %v603 = vld [vmem:[%s4] sm:$0xff]
    %v604 = vld [vmem:[%s4 + $0x8] sm:$0xff]
    %v605 = vld [vmem:[%s4 + $0x10] sm:$0xff]
    %v606 = vld [vmem:[%s4 + $0x18] sm:$0xff]
    %v607 = vld [vmem:[%s4 + $0x20] sm:$0xff]
    %v608 = vld [vmem:[%s4 + $0x28] sm:$0xff]
    %v609 = vld [vmem:[%s4 + $0x30] sm:$0xff]
    %v610 = vld [vmem:[%s4 + $0x38] sm:$0xff]
    %v611 = vld [vmem:[%s4 + $0x40] sm:$0xff]
    %v612 = vld [vmem:[%s4 + $0x48] sm:$0xff]
    %v613 = vld [vmem:[%s4 + $0x50] sm:$0xff]
    %v614 = vld [vmem:[%s4 + $0x58] sm:$0xff]
    %v615 = vld [vmem:[%s4 + $0x60] sm:$0xff]
    %v616 = vld [vmem:[%s4 + $0x68] sm:$0xff]
    %v617 = vld [vmem:[%s4 + $0x70] sm:$0xff]
    %v618 = vld [vmem:[%s4 + $0x78] sm:$0xff]
    %v619 = vld [vmem:[%s4 + $0x80] sm:$0xff]
    %v620 = vld [vmem:[%s4 + $0x88] sm:$0xff]
    %v621 = vld [vmem:[%s4 + $0x90] sm:$0xff]
    %v622 = vld [vmem:[%s4 + $0x98] sm:$0xff]
    %v623 = vld [vmem:[%s4 + $0xa0] sm:$0xff]
    %v624 = vld [vmem:[%s4 + $0xa8] sm:$0xff]
    %v625 = vld [vmem:[%s4 + $0xb0] sm:$0xff]
    %v626 = vld [vmem:[%s4 + $0xb8] sm:$0xff]
    %v627 = vld [vmem:[%s4 + $0xc0] sm:$0xff]
    %v628 = vld [vmem:[%s4 + $0xc8] sm:$0xff]
    %v629 = vld [vmem:[%s4 + $0xd0] sm:$0xff]
    %v630 = vld [vmem:[%s4 + $0xd8] sm:$0xff]
    %v631 = vld [vmem:[%s4 + $0xe0] sm:$0xff]
    %v632 = vld [vmem:[%s4 + $0xe8] sm:$0xff]
    %v633 = vld [vmem:[%s4 + $0xf0] sm:$0xff]
    %v634 = vld [vmem:[%s4 + $0xf8] sm:$0xff]
    %vm635 = vcmask 261120
    %v637 = vsel %vm635, %v602, 0
    %639 = vmatprep.subr.mxu0 %v604
    %640 = vmatpush1.msra.mxu0 %v603
    %641 = vmatprep.subr.mxu0 %v612
    %642 = vmatpush1.msra.mxu0 %v611
    %643 = vmatprep.subr.mxu0 %v620
    %644 = vmatpush1.msra.mxu0 %v619
    %645 = vmatprep.subr.mxu0 %v628
    %646 = vmatpush1.msra.mxu0 %v627
    %647 = vmatprep.subr.mxu0 0.0
    %648 = vmatpush1.msra.mxu0 0.0
    %649 = vmatprep.subr.mxu0 0.0
    %650 = vmatpush1.msra.mxu0 0.0
    %651 = vmatprep.subr.mxu0 0.0
    %652 = vmatpush1.msra.mxu0 0.0
    %653 = vmatprep.subr.mxu0 0.0
    %654 = vmatpush1.msra.mxu0 0.0
    %655 = vmatprep.subr.mxu0 0.0
    %656 = vmatpush1.msra.mxu0 0.0
    %657 = vmatprep.subr.mxu0 0.0
    %658 = vmatpush1.msra.mxu0 0.0
    %659 = vmatprep.subr.mxu0 0.0
    %660 = vmatpush1.msra.mxu0 0.0
    %661 = vmatprep.subr.mxu0 0.0
    %662 = vmatpush1.msra.mxu0 0.0
    %663 = vmatprep.subr.mxu0 0.0
    %664 = vmatpush1.msra.mxu0 0.0
    %665 = vmatprep.subr.mxu0 0.0
    %666 = vmatpush1.msra.mxu0 0.0
    %667 = vmatprep.subr.mxu0 0.0
    %668 = vmatpush1.msra.mxu0 0.0
    %669 = vmatprep.subr.mxu0 0.0
    %670 = vmatpush1.msra.mxu0 0.0
    %671 = vmatprep.subr.mxu0 0.0
    %672 = vmatpush1.msra.mxu0 0.0
    %673 = vmatprep.subr.mxu0 0.0
    %674 = vmatpush1.msra.mxu0 0.0
    %675 = vmatprep.subr.mxu0 0.0
    %676 = vmatpush1.msra.mxu0 0.0
    %677 = vmatprep.subr.mxu0 0.0
    %678 = vmatpush1.msra.mxu0 0.0
    %679 = vmatprep.subr.mxu0 0.0
    %680 = vmatpush1.msra.mxu0 0.0
    %681 = vmatprep.subr.mxu0 0.0
    %682 = vmatpush1.msra.mxu0 0.0
    %683 = vmatprep.subr.mxu0 0.0
    %684 = vmatpush1.msra.mxu0 0.0
    %685 = vmatprep.subr.mxu0 0.0
    %686 = vmatpush1.msra.mxu0 0.0
    %687 = vmatprep.subr.mxu0 0.0
    %688 = vmatpush1.msra.mxu0 0.0
    %689 = vmatprep.subr.mxu0 0.0
    %690 = vmatpush1.msra.mxu0 0.0
    %691 = vmatprep.subr.mxu0 0.0
    %692 = vmatpush1.msra.mxu0 0.0
    %693 = vmatprep.subr.mxu0 0.0
    %694 = vmatpush1.msra.mxu0 0.0
    %695 = vmatprep.subr.mxu0 0.0
    %696 = vmatpush1.msra.mxu0 0.0
    %697 = vmatprep.subr.mxu0 0.0
    %698 = vmatpush1.msra.mxu0 0.0
    %699 = vmatprep.subr.mxu0 0.0
    %700 = vmatpush1.msra.mxu0 0.0
    %701 = vmatprep.subr.mxu0 0.0
    %702 = vmatpush1.msra.mxu0 0.0
    %703 = vmatprep.mubr.f32.mxu0 0.0
    %704 = vmatmul.mubr.f32.gmra.mrb[0].mxu0 %v637
    %v705 = vpop.f32.mrb[0].mxu0
    %v706 = vadd.f32 0.0, %v705
    %v707 = vpop.f32.mrb[0].mxu0
    %v708 = vadd.f32 0.0, %v707
    %709 = vdwg.mxu0
    %710 = vmatprep.subr.mxu0 %v606
    %711 = vmatpush1.msra.mxu0 %v605
    %712 = vmatprep.subr.mxu0 %v614
    %713 = vmatpush1.msra.mxu0 %v613
    %714 = vmatprep.subr.mxu0 %v622
    %715 = vmatpush1.msra.mxu0 %v621
    %716 = vmatprep.subr.mxu0 %v630
    %717 = vmatpush1.msra.mxu0 %v629
    %718 = vmatprep.subr.mxu0 0.0
    %719 = vmatpush1.msra.mxu0 0.0
    %720 = vmatprep.subr.mxu0 0.0
    %721 = vmatpush1.msra.mxu0 0.0
    %722 = vmatprep.subr.mxu0 0.0
    %723 = vmatpush1.msra.mxu0 0.0
    %724 = vmatprep.subr.mxu0 0.0
    %725 = vmatpush1.msra.mxu0 0.0
    %726 = vmatprep.subr.mxu0 0.0
    %727 = vmatpush1.msra.mxu0 0.0
    %728 = vmatprep.subr.mxu0 0.0
    %729 = vmatpush1.msra.mxu0 0.0
    %730 = vmatprep.subr.mxu0 0.0
    %731 = vmatpush1.msra.mxu0 0.0
    %732 = vmatprep.subr.mxu0 0.0
    %733 = vmatpush1.msra.mxu0 0.0
    %734 = vmatprep.subr.mxu0 0.0
    %735 = vmatpush1.msra.mxu0 0.0
    %736 = vmatprep.subr.mxu0 0.0
    %737 = vmatpush1.msra.mxu0 0.0
    %738 = vmatprep.subr.mxu0 0.0
    %739 = vmatpush1.msra.mxu0 0.0
    %740 = vmatprep.subr.mxu0 0.0
    %741 = vmatpush1.msra.mxu0 0.0
    %742 = vmatprep.subr.mxu0 0.0
    %743 = vmatpush1.msra.mxu0 0.0
    %744 = vmatprep.subr.mxu0 0.0
    %745 = vmatpush1.msra.mxu0 0.0
    %746 = vmatprep.subr.mxu0 0.0
    %747 = vmatpush1.msra.mxu0 0.0
    %748 = vmatprep.subr.mxu0 0.0
    %749 = vmatpush1.msra.mxu0 0.0
    %750 = vmatprep.subr.mxu0 0.0
    %751 = vmatpush1.msra.mxu0 0.0
    %752 = vmatprep.subr.mxu0 0.0
    %753 = vmatpush1.msra.mxu0 0.0
    %754 = vmatprep.subr.mxu0 0.0
    %755 = vmatpush1.msra.mxu0 0.0
    %756 = vmatprep.subr.mxu0 0.0
    %757 = vmatpush1.msra.mxu0 0.0
    %758 = vmatprep.subr.mxu0 0.0
    %759 = vmatpush1.msra.mxu0 0.0
    %760 = vmatprep.subr.mxu0 0.0
    %761 = vmatpush1.msra.mxu0 0.0
    %762 = vmatprep.subr.mxu0 0.0
    %763 = vmatpush1.msra.mxu0 0.0
    %764 = vmatprep.subr.mxu0 0.0
    %765 = vmatpush1.msra.mxu0 0.0
    %766 = vmatprep.subr.mxu0 0.0
    %767 = vmatpush1.msra.mxu0 0.0
    %768 = vmatprep.subr.mxu0 0.0
    %769 = vmatpush1.msra.mxu0 0.0
    %770 = vmatprep.subr.mxu0 0.0
    %771 = vmatpush1.msra.mxu0 0.0
    %772 = vmatprep.subr.mxu0 0.0
    %773 = vmatpush1.msra.mxu0 0.0
    %774 = vmatprep.mubr.f32.mxu0 0.0
    %775 = vmatmul.mubr.f32.gmra.mrb[0].mxu0 %v637
    %v776 = vpop.f32.mrb[0].mxu0
    %v777 = vadd.f32 0.0, %v776
    %v778 = vpop.f32.mrb[0].mxu0
    %v779 = vadd.f32 0.0, %v778
    %780 = vdwg.mxu0
    %781 = vmatprep.subr.mxu0 %v608
    %782 = vmatpush1.msra.mxu0 %v607
    %783 = vmatprep.subr.mxu0 %v616
    %784 = vmatpush1.msra.mxu0 %v615
    %785 = vmatprep.subr.mxu0 %v624
    %786 = vmatpush1.msra.mxu0 %v623
    %787 = vmatprep.subr.mxu0 %v632
    %788 = vmatpush1.msra.mxu0 %v631
    %789 = vmatprep.subr.mxu0 0.0
    %790 = vmatpush1.msra.mxu0 0.0
    %791 = vmatprep.subr.mxu0 0.0
    %792 = vmatpush1.msra.mxu0 0.0
    %793 = vmatprep.subr.mxu0 0.0
    %794 = vmatpush1.msra.mxu0 0.0
    %795 = vmatprep.subr.mxu0 0.0
    %796 = vmatpush1.msra.mxu0 0.0
    %797 = vmatprep.subr.mxu0 0.0
    %798 = vmatpush1.msra.mxu0 0.0
    %799 = vmatprep.subr.mxu0 0.0
    %800 = vmatpush1.msra.mxu0 0.0
    %801 = vmatprep.subr.mxu0 0.0
    %802 = vmatpush1.msra.mxu0 0.0
    %803 = vmatprep.subr.mxu0 0.0
    %804 = vmatpush1.msra.mxu0 0.0
    %805 = vmatprep.subr.mxu0 0.0
    %806 = vmatpush1.msra.mxu0 0.0
    %807 = vmatprep.subr.mxu0 0.0
    %808 = vmatpush1.msra.mxu0 0.0
    %809 = vmatprep.subr.mxu0 0.0
    %810 = vmatpush1.msra.mxu0 0.0
    %811 = vmatprep.subr.mxu0 0.0
    %812 = vmatpush1.msra.mxu0 0.0
    %813 = vmatprep.subr.mxu0 0.0
    %814 = vmatpush1.msra.mxu0 0.0
    %815 = vmatprep.subr.mxu0 0.0
    %816 = vmatpush1.msra.mxu0 0.0
    %817 = vmatprep.subr.mxu0 0.0
    %818 = vmatpush1.msra.mxu0 0.0
    %819 = vmatprep.subr.mxu0 0.0
    %820 = vmatpush1.msra.mxu0 0.0
    %821 = vmatprep.subr.mxu0 0.0
    %822 = vmatpush1.msra.mxu0 0.0
    %823 = vmatprep.subr.mxu0 0.0
    %824 = vmatpush1.msra.mxu0 0.0
    %825 = vmatprep.subr.mxu0 0.0
    %826 = vmatpush1.msra.mxu0 0.0
    %827 = vmatprep.subr.mxu0 0.0
    %828 = vmatpush1.msra.mxu0 0.0
    %829 = vmatprep.subr.mxu0 0.0
    %830 = vmatpush1.msra.mxu0 0.0
    %831 = vmatprep.subr.mxu0 0.0
    %832 = vmatpush1.msra.mxu0 0.0
    %833 = vmatprep.subr.mxu0 0.0
    %834 = vmatpush1.msra.mxu0 0.0
    %835 = vmatprep.subr.mxu0 0.0
    %836 = vmatpush1.msra.mxu0 0.0
    %837 = vmatprep.subr.mxu0 0.0
    %838 = vmatpush1.msra.mxu0 0.0
    %839 = vmatprep.subr.mxu0 0.0
    %840 = vmatpush1.msra.mxu0 0.0
    %841 = vmatprep.subr.mxu0 0.0
    %842 = vmatpush1.msra.mxu0 0.0
    %843 = vmatprep.subr.mxu0 0.0
    %844 = vmatpush1.msra.mxu0 0.0
    %845 = vmatprep.mubr.f32.mxu0 0.0
    %846 = vmatmul.mubr.f32.gmra.mrb[0].mxu0 %v637
    %v847 = vpop.f32.mrb[0].mxu0
    %v848 = vadd.f32 0.0, %v847
    %v849 = vpop.f32.mrb[0].mxu0
    %v850 = vadd.f32 0.0, %v849
    %851 = vdwg.mxu0
    %852 = vmatprep.subr.mxu0 %v610
    %853 = vmatpush1.msra.mxu0 %v609
    %854 = vmatprep.subr.mxu0 %v618
    %855 = vmatpush1.msra.mxu0 %v617
    %856 = vmatprep.subr.mxu0 %v626
    %857 = vmatpush1.msra.mxu0 %v625
    %858 = vmatprep.subr.mxu0 %v634
    %859 = vmatpush1.msra.mxu0 %v633
    %860 = vmatprep.subr.mxu0 0.0
    %861 = vmatpush1.msra.mxu0 0.0
    %862 = vmatprep.subr.mxu0 0.0
    %863 = vmatpush1.msra.mxu0 0.0
    %864 = vmatprep.subr.mxu0 0.0
    %865 = vmatpush1.msra.mxu0 0.0
    %866 = vmatprep.subr.mxu0 0.0
    %867 = vmatpush1.msra.mxu0 0.0
    %868 = vmatprep.subr.mxu0 0.0
    %869 = vmatpush1.msra.mxu0 0.0
    %870 = vmatprep.subr.mxu0 0.0
    %871 = vmatpush1.msra.mxu0 0.0
    %872 = vmatprep.subr.mxu0 0.0
    %873 = vmatpush1.msra.mxu0 0.0
    %874 = vmatprep.subr.mxu0 0.0
    %875 = vmatpush1.msra.mxu0 0.0
    %876 = vmatprep.subr.mxu0 0.0
    %877 = vmatpush1.msra.mxu0 0.0
    %878 = vmatprep.subr.mxu0 0.0
    %879 = vmatpush1.msra.mxu0 0.0
    %880 = vmatprep.subr.mxu0 0.0
    %881 = vmatpush1.msra.mxu0 0.0
    %882 = vmatprep.subr.mxu0 0.0
    %883 = vmatpush1.msra.mxu0 0.0
    %884 = vmatprep.subr.mxu0 0.0
    %885 = vmatpush1.msra.mxu0 0.0
    %886 = vmatprep.subr.mxu0 0.0
    %887 = vmatpush1.msra.mxu0 0.0
    %888 = vmatprep.subr.mxu0 0.0
    %889 = vmatpush1.msra.mxu0 0.0
    %890 = vmatprep.subr.mxu0 0.0
    %891 = vmatpush1.msra.mxu0 0.0
    %892 = vmatprep.subr.mxu0 0.0
    %893 = vmatpush1.msra.mxu0 0.0
    %894 = vmatprep.subr.mxu0 0.0
    %895 = vmatpush1.msra.mxu0 0.0
    %896 = vmatprep.subr.mxu0 0.0
    %897 = vmatpush1.msra.mxu0 0.0
    %898 = vmatprep.subr.mxu0 0.0
    %899 = vmatpush1.msra.mxu0 0.0
    %900 = vmatprep.subr.mxu0 0.0
    %901 = vmatpush1.msra.mxu0 0.0
    %902 = vmatprep.subr.mxu0 0.0
    %903 = vmatpush1.msra.mxu0 0.0
    %904 = vmatprep.subr.mxu0 0.0
    %905 = vmatpush1.msra.mxu0 0.0
    %906 = vmatprep.subr.mxu0 0.0
    %907 = vmatpush1.msra.mxu0 0.0
    %908 = vmatprep.subr.mxu0 0.0
    %909 = vmatpush1.msra.mxu0 0.0
    %910 = vmatprep.subr.mxu0 0.0
    %911 = vmatpush1.msra.mxu0 0.0
    %912 = vmatprep.subr.mxu0 0.0
    %913 = vmatpush1.msra.mxu0 0.0
    %914 = vmatprep.subr.mxu0 0.0
    %915 = vmatpush1.msra.mxu0 0.0
    %916 = vmatprep.mubr.f32.mxu0 0.0
    %917 = vmatmul.mubr.f32.gmra.mrb[0].mxu0 %v637
    %v918 = vpop.f32.mrb[0].mxu0
    %v919 = vadd.f32 0.0, %v918
    %v920 = vpop.f32.mrb[0].mxu0
    %v921 = vadd.f32 0.0, %v920
    %922 = vdwg.mxu0
    %v923 = vmul.f32 %v706, %v706
    %v924 = vmul.f32 %v708, %v708
    %v925 = vadd.f32 %v923, 0.0
    %v926 = vadd.f32 %v924, 0.0
    %v927 = vmul.f32 %v777, %v777
    %v928 = vmul.f32 %v779, %v779
    %v929 = vadd.f32 %v925, %v927
    %v930 = vadd.f32 %v926, %v928
    %v931 = vmul.f32 %v848, %v848
    %v932 = vmul.f32 %v850, %v850
    %v933 = vadd.f32 %v929, %v931
    %v934 = vadd.f32 %v930, %v932
    %v935 = vmul.f32 %v919, %v919
    %v936 = vmul.f32 %v921, %v921
    %v937 = vadd.f32 %v933, %v935
    %v938 = vadd.f32 %v934, %v936
    %v939 = vrsqrt.pop %v937
    %v940 = vmul.f32 %v937, %v939
    %vm941 = vcmp.eq.f32.partialorder %v937, inf
    %v942 = vsel %vm941, %v937, %v940
    %vm943 = vcmp.eq.f32.partialorder %v937, 0.0
    %v944 = vand.u32 %v937, 2147483648
    %v945 = vsel %vm943, %v944, %v942
    %v946 = vrsqrt.pop %v938
    %v947 = vmul.f32 %v938, %v946
    %vm948 = vcmp.eq.f32.partialorder %v938, inf
    %v949 = vsel %vm948, %v938, %v947
    %vm950 = vcmp.eq.f32.partialorder %v938, 0.0
    %v951 = vand.u32 %v938, 2147483648
    %v952 = vsel %vm950, %v951, %v949
    %s953 = sld [smem:[#allocation2]]
    %v954 = vsub.f32 %v945, 1.0
    %v955 = vsub.f32 %v952, 1.0
    %v956 = vmul.f32 %v954, %v954
    %v957 = vmul.f32 %v955, %v955
    %vm958 = vcmask 1041408
    %v959 = vsel %vm958, %v956, 0.0
    %v960 = vsel %vm958, %v957, 0.0
    %v961 = vadd.f32 %v959, %v960
    %962 = vadd.xlane.f32.xlu0 %v961
    %v963 = vpop.xlane.xlu0 %962
    %v964 = vrot.slane %v963, 4
    %v965 = vadd.f32 %v963, %v964
    %v966 = vrot.slane %v965, 2
    %v967 = vadd.f32 %v965, %v966
    %v968 = vrot.slane %v967, 1
    %v969 = vadd.f32 %v967, %v968
    %s970 = vtos %v969
    %s971 = sadd.f32 %s953, %s970
    %s972 = scalar_lea.smem [#allocation2], 0
    %973 = sst [smem:[%s972]] %s971
    // Predicated region
    $region30: #{gradient_penalty_loss_pallas.1} parent=1 // pred_check
      %p974 = pneg %p24
    $region31: #{gradient_penalty_loss_pallas.1} parent=1 // pred_check_branch
      %976 = sbr.rel (%p974) target = $region33
    $region32: #{gradient_penalty_loss_pallas.1} parent=1 // pred_region
      %s977 = sld [smem:[#allocation2]]
      %s978 = smul.f32 %s977, 0.001953125
      %979 = sst [smem:[%s972]] %s978
    $region33: #{gradient_penalty_loss_pallas.1} parent=1 // pred_fallthru
      _
    // Predicated region
    $region34: #{gradient_penalty_loss_pallas.1} parent=1 // pred_check
      _
    $region35: #{gradient_penalty_loss_pallas.1} parent=1 // pred_check_branch
      %981 = sbr.rel (0) target = $region37
    $region36: #{gradient_penalty_loss_pallas.1} parent=1 // pred_region
      %s983 = ssub.s32 16, 16
      %984 = vsyncadd [#allocation3], %s983
      %987 = dma.smem_to_hbm [#allocation2], 16, %s6, [#allocation3]
    $region37: #{gradient_penalty_loss_pallas.1} parent=1 // pred_fallthru
      _
    // Predicated region
    $region38: #{gradient_penalty_loss_pallas.1} parent=1 // pred_check
      _
    $region39: #{gradient_penalty_loss_pallas.1} parent=1 // pred_check_branch
      %989 = sbr.rel (0) target = $region41
    $region40: #{gradient_penalty_loss_pallas.1} parent=1 // pred_region
      %990 = dma.done [#allocation3], 16
    $region41: #{gradient_penalty_loss_pallas.1} parent=1 // pred_fallthru
      _
    %991 = sfence
    %992 = vsyncpa [#allocation3], 1

</llo_original>
